<compile_context>
chip_gen: v6e
topology: v6e:2x2x1
jax: 0.10.0
libtpu: 0.0.40
codegen_flags: <defaults>
</compile_context>

<pallas_src>
from functools import partial

import jax
import jax.numpy as jnp
from jax.experimental import pallas as pl
from jax.experimental.pallas import tpu as pltpu


def _round_up(x: int, m: int) -> int:
    return ((x + m - 1) // m) * m


def _make_evidential_kernel(num_classes: int):
    num_classes_f = float(num_classes)

    def kernel(x_ref, w_ref, b_ref, evidence_ref, s_ref):
        # Transposed layout: class/latent axes on sublanes, particles on lanes.
        x = x_ref[...]                                    # (D, TN) f32
        w = w_ref[...]                                    # (C, D)  f32
        b = b_ref[...]                                    # (C, 1)  f32

        # final_layer: Linear + ReLU (tiny MXU matmul, f32 accumulation).
        logits = jnp.dot(w, x, preferred_element_type=jnp.float32) + b
        evidence = jnp.maximum(logits, 0.0)               # (C, TN)

        evidence_ref[...] = evidence
        # S = sum(evidence + 1) over classes = sum(evidence) + num_classes.
        # Class axis is the short sublane axis -> cheap XLU reduce, lane-dense store.
        s_ref[...] = jnp.sum(evidence, axis=0, keepdims=True) + num_classes_f

    return kernel


@partial(jax.jit, static_argnames=("num_classes", "eps", "tile_n"))
def _evidential_forward(latent, w, b, *, num_classes, eps, tile_n):
    n, d = latent.shape
    c = w.shape[1]

    # Lane-dense layout: particle axis N on the lane (last) dimension.
    x_t = latent.T                       # (D, N)
    w_t = w.T                            # (C, D)
    b_t = b.reshape(c, 1)                # (C, 1)

    # Row tile: multiple of 128 lanes, capped at tile_n (default 2048, safe on all gens).
    tn = _round_up(max(128, min(tile_n, _round_up(n, 128))), 128)
    n_pad = _round_up(n, tn)
    if n_pad != n:
        x_t = jnp.pad(x_t, ((0, 0), (0, n_pad - n)))

    grid = (n_pad // tn,)

    evidence_t, s_t = pl.pallas_call(
        _make_evidential_kernel(num_classes),
        grid=grid,
        out_shape=(
            jax.ShapeDtypeStruct((c, n_pad), jnp.float32),   # evidence (C, N)
            jax.ShapeDtypeStruct((1, n_pad), jnp.float32),   # S        (1, N)
        ),
        in_specs=[
            pl.BlockSpec((d, tn), lambda i: (0, i)),   # latent tile, pipelined
            pl.BlockSpec((c, d), lambda i: (0, 0)),    # weight pinned across steps
            pl.BlockSpec((c, 1), lambda i: (0, 0)),    # bias pinned across steps
        ],
        out_specs=(
            pl.BlockSpec((c, tn), lambda i: (0, i)),
            pl.BlockSpec((1, tn), lambda i: (0, i)),
        ),
        compiler_params=pltpu.CompilerParams(
            dimension_semantics=("parallel",),         # megacore split on v7x
        ),
    )(x_t, w_t, b_t)

    # Back to the PyTorch (N, C)/(N, 1) layout; derive the redundant outputs
    # here (fused by XLA) rather than writing them from the kernel.
    evidence = evidence_t[:, :n].T                       # (N, C)
    S = s_t[:, :n].T                                     # (N, 1)
    concentration = evidence + 1.0
    uncertainty = num_classes / (S + eps)
    expected_probability = concentration / S
    return evidence, uncertainty, concentration, expected_probability


def evidential_particle_classifier(latent, w, b, *, num_classes, eps=0.0, tile_n=2048):
    """latent: (N, latent_size) f32; w: (latent_size, num_classes); b: (num_classes,)."""
    assert w.shape[1] == num_classes and b.shape == (num_classes,)
    ev, unc, conc, prob = _evidential_forward(
        latent, w, b, num_classes=num_classes, eps=float(eps), tile_n=int(tile_n))
    # Mirror the PyTorch result dict (lists of tensors).
    return {
        "evidence": [ev],
        "uncertainty": [unc],
        "concentration": [conc],
        "expected_probability": [prob],
    }


def _reference(latent, w, b, num_classes, eps):
    logits = latent @ w + b[None, :]
    evidence = jnp.maximum(logits, 0.0)
    concentration = evidence + 1.0
    S = jnp.sum(concentration, axis=1, keepdims=True)
    uncertainty = num_classes / (S + eps)
    return evidence, uncertainty, concentration, concentration / S


def _check(n, latent_size, num_classes, eps, tile_n, key):
    k_x, k_w, k_b = jax.random.split(key, 3)
    # Deterministic stand-in for the encoder output (sparse CNN not ported).
    latent = jax.random.normal(k_x, (n, latent_size), dtype=jnp.float32)
    # PyTorch-default-like init of Linear(latent_size, num_classes).
    bound = 1.0 / (latent_size ** 0.5)
    w = jax.random.uniform(k_w, (latent_size, num_classes), jnp.float32, -bound, bound)
    b = jax.random.uniform(k_b, (num_classes,), jnp.float32, -bound, bound)

    res = evidential_particle_classifier(latent, w, b, num_classes=num_classes,
                                         eps=eps, tile_n=tile_n)
    jax.block_until_ready(res)

    ev_ref, unc_ref, conc_ref, prob_ref = _reference(latent, w, b, num_classes, eps)
    assert jnp.allclose(res["evidence"][0], ev_ref, atol=1e-5)
    assert jnp.allclose(res["uncertainty"][0], unc_ref, atol=1e-5)
    assert jnp.allclose(res["concentration"][0], conc_ref, atol=1e-5)
    assert jnp.allclose(res["expected_probability"][0], prob_ref, atol=1e-5)


if __name__ == "__main__":
    key = jax.random.PRNGKey(0)
    k0, k1 = jax.random.split(key)
    # Small shapes consistent with the module: latent_size=32, num_classes=5.
    _check(n=8, latent_size=32, num_classes=5, eps=0.0, tile_n=2048, key=k0)
    # Multi-tile grid path (3 tiles of 128 rows, with padding) + pinned weights.
    _check(n=300, latent_size=32, num_classes=5, eps=0.0, tile_n=128, key=k1)
    print("KERNEL_OK")
</pallas_src>

<mosaic_0001>
module attributes {stable_mosaic.version = 11 : i64} {
  func.func @kernel(%arg0: i32, %arg1: memref<32x128xf32, #tpu.memory_space<vmem>>, %arg2: memref<5x32xf32, #tpu.memory_space<vmem>>, %arg3: memref<5x1xf32, #tpu.memory_space<vmem>>, %arg4: memref<5x128xf32, #tpu.memory_space<vmem>>, %arg5: memref<1x128xf32, #tpu.memory_space<vmem>>) attributes {dimension_semantics = [#tpu.dimension_semantics<parallel>], iteration_bounds = array<i64: 1>, scalar_prefetch = 0 : i64, scratch_operands = 0 : i64, tpu.core_type = #tpu.core_type<tc>, window_params = [{transform_indices = @transform_0, window_bounds = array<i64: 32, 128>}, {pipeline_mode = #tpu.pipeline_mode<synchronous>, transform_indices = @transform_1, window_bounds = array<i64: 5, 32>}, {pipeline_mode = #tpu.pipeline_mode<synchronous>, transform_indices = @transform_2, window_bounds = array<i64: 5, 1>}, {transform_indices = @transform_3, window_bounds = array<i64: 5, 128>}, {transform_indices = @transform_4, window_bounds = array<i64: 1, 128>}]} {
    %c0 = arith.constant 0 : index
    %c0_0 = arith.constant 0 : index
    %0 = vector.load %arg1[%c0, %c0_0] : memref<32x128xf32, #tpu.memory_space<vmem>>, vector<32x128xf32>
    %c0_1 = arith.constant 0 : index
    %c0_2 = arith.constant 0 : index
    %1 = vector.load %arg2[%c0_1, %c0_2] : memref<5x32xf32, #tpu.memory_space<vmem>>, vector<5x32xf32>
    %c0_3 = arith.constant 0 : index
    %c0_4 = arith.constant 0 : index
    %2 = vector.load %arg3[%c0_3, %c0_4] : memref<5x1xf32, #tpu.memory_space<vmem>>, vector<5x1xf32>
    %cst = arith.constant dense<0.000000e+00> : vector<5x128xf32>
    %3 = tpu.matmul %1, %0, %cst {dimension_numbers = #tpu.dot_dimension_numbers<[1], [0], [0], [1], [0, 0, 1, 1], [], []>} : vector<5x32xf32>, vector<32x128xf32>, vector<5x128xf32> -> vector<5x128xf32>
    %4 = vector.broadcast %2 : vector<5x1xf32> to vector<5x128xf32>
    %5 = arith.addf %3, %4 : vector<5x128xf32>
    %cst_5 = arith.constant 0.000000e+00 : f32
    %6 = vector.broadcast %cst_5 : f32 to vector<5x128xf32>
    %7 = arith.maximumf %5, %6 : vector<5x128xf32>
    %c0_6 = arith.constant 0 : index
    %c0_7 = arith.constant 0 : index
    %8 = vector.load %arg4[%c0_6, %c0_7] : memref<5x128xf32, #tpu.memory_space<vmem>>, vector<5x128xf32>
    tpu.vector_store %arg4[%c0_6, %c0_7], %7 {strides = array<i32>} : memref<5x128xf32, #tpu.memory_space<vmem>>, vector<5x128xf32>,
    %cst_8 = arith.constant dense<0.000000e+00> : vector<128xf32>
    %9 = vector.multi_reduction <add>, %7, %cst_8 [0] : vector<5x128xf32> to vector<128xf32>
    %10 = vector.shape_cast %9 : vector<128xf32> to vector<1x128xf32>
    %cst_9 = arith.constant 5.000000e+00 : f32
    %11 = vector.broadcast %cst_9 : f32 to vector<1x128xf32>
    %12 = arith.addf %10, %11 : vector<1x128xf32>
    %c0_10 = arith.constant 0 : index
    %c0_11 = arith.constant 0 : index
    %13 = vector.load %arg5[%c0_10, %c0_11] : memref<1x128xf32, #tpu.memory_space<vmem>>, vector<1x128xf32>
    tpu.vector_store %arg5[%c0_10, %c0_11], %12 {strides = array<i32>} : memref<1x128xf32, #tpu.memory_space<vmem>>, vector<1x128xf32>,
    return
  }
  func.func @transform_0(%arg0: i32) -> (i32, i32) {
    %c0_i32 = arith.constant 0 : i32
    %c0_i32_0 = arith.constant 0 : i32
    return %c0_i32, %arg0 : i32, i32
  }
  func.func @transform_1(%arg0: i32) -> (i32, i32) {
    %c0_i32 = arith.constant 0 : i32
    %c0_i32_0 = arith.constant 0 : i32
    %c0_i32_1 = arith.constant 0 : i32
    return %c0_i32, %c0_i32_0 : i32, i32
  }
  func.func @transform_2(%arg0: i32) -> (i32, i32) {
    %c0_i32 = arith.constant 0 : i32
    %c0_i32_0 = arith.constant 0 : i32
    %c0_i32_1 = arith.constant 0 : i32
    return %c0_i32, %c0_i32_0 : i32, i32
  }
  func.func @transform_3(%arg0: i32) -> (i32, i32) {
    %c0_i32 = arith.constant 0 : i32
    %c0_i32_0 = arith.constant 0 : i32
    return %c0_i32, %arg0 : i32, i32
  }
  func.func @transform_4(%arg0: i32) -> (i32, i32) {
    %c0_i32 = arith.constant 0 : i32
    %c0_i32_0 = arith.constant 0 : i32
    return %c0_i32, %arg0 : i32, i32
  }
}

</mosaic_0001>

<llo_original>
// kernel: _evidential_forward.1
$region0: #{_evidential_forward.1}
  #allocation0 [shape = 'u32[]', space=smem, size = 0x4, offset = 0x4, fixed_abs, tag = 'smem constant byte address 0x4 - core index']
  #allocation1 [shape = 'u32[144,128]{1,0:T(1,128)}', space=vmem, size = 0x12000, scoped, tag = 'internal scratch']
  %s0 = inlined_call_operand.vmem [shape: f32[32,128], index: 0, kind: input, shape index: {}]
  %s1 = inlined_call_operand.vmem [shape: f32[5,32], index: 1, kind: input, shape index: {}]
  %s2 = inlined_call_operand.vmem [shape: f32[5,1], index: 2, kind: input, shape index: {}]
  %s3 = inlined_call_operand.vmem [shape: f32[5,128], index: 3, kind: output, shape index: {0}]
  %s4 = inlined_call_operand.vmem [shape: f32[1,128], index: 4, kind: output, shape index: {1}]
  %5 = xla_tuple %s3, %s4
  %s6 = sld [smem:[#allocation0]]
  $region30: #{_evidential_forward.1} parent=0
    _
  %s8 = ssub.s32 1, %s6
  %s9 = scalar_select 0, %s8, %s6
  // Predicated region
  $region2: #{_evidential_forward.1} parent=0 // pred_check
    _
  $region3: #{_evidential_forward.1} parent=0 // pred_check_branch
    %11 = sbr.rel (0) target = $region5
  $region4: #{_evidential_forward.1} parent=0 // pred_region
    _
  $region5: #{_evidential_forward.1} parent=0 // pred_fallthru
    _
  // Predicated region
  $region6: #{_evidential_forward.1} parent=0 // pred_check
    _
  $region7: #{_evidential_forward.1} parent=0 // pred_check_branch
    %13 = sbr.rel (0) target = $region9
  $region8: #{_evidential_forward.1} parent=0 // pred_region
    _
  $region9: #{_evidential_forward.1} parent=0 // pred_fallthru
    _
  // Predicated region
  $region10: #{_evidential_forward.1} parent=0 // pred_check
    _
  $region11: #{_evidential_forward.1} parent=0 // pred_check_branch
    %15 = sbr.rel (0) target = $region13
  $region12: #{_evidential_forward.1} parent=0 // pred_region
    _
  $region13: #{_evidential_forward.1} parent=0 // pred_fallthru
    _
  %v16 = vld [vmem:[%s0] sm:$0xff]
  %v17 = vld [vmem:[%s0 + $0x8] sm:$0xff]
  %v18 = vld [vmem:[%s0 + $0x10] sm:$0xff]
  %v19 = vld [vmem:[%s0 + $0x18] sm:$0xff]
  %v20 = vld [vmem:[%s1] sm:$0x1f]
  %v21 = vld [vmem:[%s2] sm:$0x1f]
  %23 = vset.pattern.permute.xlu0 0
  %24 = vperm.xlu0 %23, %v21
  %v25 = vpop.permute.xlu0 %24
  %vm27 = vcmask 261120
  %v29 = vsel %vm27, %v20, 0
  %31 = vmatprep.subr.mxu0 0.0
  %32 = vmatpush1.msra.mxu0 0.0
  %33 = vmatprep.subr.mxu0 0.0
  %34 = vmatpush1.msra.mxu0 0.0
  %35 = vmatprep.subr.mxu0 0.0
  %36 = vmatpush1.msra.mxu0 0.0
  %37 = vmatprep.subr.mxu0 0.0
  %38 = vmatpush1.msra.mxu0 0.0
  %39 = vmatprep.subr.mxu0 0.0
  %40 = vmatpush1.msra.mxu0 0.0
  %41 = vmatprep.subr.mxu0 0.0
  %42 = vmatpush1.msra.mxu0 0.0
  %43 = vmatprep.subr.mxu0 0.0
  %44 = vmatpush1.msra.mxu0 0.0
  %45 = vmatprep.subr.mxu0 0.0
  %46 = vmatpush1.msra.mxu0 0.0
  %47 = vmatprep.subr.mxu0 0.0
  %48 = vmatpush1.msra.mxu0 0.0
  %49 = vmatprep.subr.mxu0 0.0
  %50 = vmatpush1.msra.mxu0 0.0
  %51 = vmatprep.subr.mxu0 0.0
  %52 = vmatpush1.msra.mxu0 0.0
  %53 = vmatprep.subr.mxu0 0.0
  %54 = vmatpush1.msra.mxu0 0.0
  %55 = vmatprep.subr.mxu0 0.0
  %56 = vmatpush1.msra.mxu0 %v19
  %57 = vmatprep.subr.mxu0 0.0
  %58 = vmatpush1.msra.mxu0 %v18
  %59 = vmatprep.subr.mxu0 0.0
  %60 = vmatpush1.msra.mxu0 %v17
  %61 = vmatprep.subr.mxu0 0.0
  %62 = vmatpush1.msra.mxu0 %v16
  %63 = vmatprep.subr.mxu0 0.0
  %64 = vmatpush2.msra.mxu0 0.0
  %65 = vmatprep.subr.mxu0 0.0
  %66 = vmatpush2.msra.mxu0 0.0
  %67 = vmatprep.subr.mxu0 0.0
  %68 = vmatpush2.msra.mxu0 0.0
  %69 = vmatprep.subr.mxu0 0.0
  %70 = vmatpush2.msra.mxu0 0.0
  %71 = vmatprep.subr.mxu0 0.0
  %72 = vmatpush2.msra.mxu0 0.0
  %73 = vmatprep.subr.mxu0 0.0
  %74 = vmatpush2.msra.mxu0 0.0
  %75 = vmatprep.subr.mxu0 0.0
  %76 = vmatpush2.msra.mxu0 0.0
  %77 = vmatprep.subr.mxu0 0.0
  %78 = vmatpush2.msra.mxu0 0.0
  %79 = vmatprep.subr.mxu0 0.0
  %80 = vmatpush2.msra.mxu0 0.0
  %81 = vmatprep.subr.mxu0 0.0
  %82 = vmatpush2.msra.mxu0 0.0
  %83 = vmatprep.subr.mxu0 0.0
  %84 = vmatpush2.msra.mxu0 0.0
  %85 = vmatprep.subr.mxu0 0.0
  %86 = vmatpush2.msra.mxu0 0.0
  %87 = vmatprep.subr.mxu0 0.0
  %88 = vmatpush2.msra.mxu0 0.0
  %89 = vmatprep.subr.mxu0 0.0
  %90 = vmatpush2.msra.mxu0 0.0
  %91 = vmatprep.subr.mxu0 0.0
  %92 = vmatpush2.msra.mxu0 0.0
  %93 = vmatprep.subr.mxu0 0.0
  %94 = vmatpush2.msra.mxu0 0.0
  %95 = vmatprep.mubr.f32.mxu0 0.0
  %96 = vmatmul.mubr.f32.gmra.mxu0 %v29
  %v97 = vpop.f32.mrf.mxu0
  %v98 = vadd.f32 %v25, %v97
  %v99 = vpop.f32.mrf.mxu0
  %100 = vdwg.mxu0
  %v101 = vmax.f32 %v98, 0.0
  %102 = vst [vmem:[%s3] sm:$0x1f] %v101
  %vm103 = vcmask 1044480
  %v104 = vsel %vm103, %v101, 0.0
  %v105 = vrot.slane %v104, 4
  %v106 = vadd.f32 %v104, %v105
  %v107 = vrot.slane %v106, 2
  %v108 = vadd.f32 %v106, %v107
  %v109 = vrot.slane %v108, 1
  %v110 = vadd.f32 %v108, %v109
  %v111 = vadd.f32 %v110, 5.0
  %112 = vst [vmem:[%s4] sm:$0x1] %v111
  // Predicated region
  $region14: #{_evidential_forward.1} parent=0 // pred_check
    _
  $region15: #{_evidential_forward.1} parent=0 // pred_check_branch
    %114 = sbr.rel (0) target = $region17
  $region16: #{_evidential_forward.1} parent=0 // pred_region
    _
  $region17: #{_evidential_forward.1} parent=0 // pred_fallthru
    _
  // Predicated region
  $region18: #{_evidential_forward.1} parent=0 // pred_check
    _
  $region19: #{_evidential_forward.1} parent=0 // pred_check_branch
    %116 = sbr.rel (0) target = $region21
  $region20: #{_evidential_forward.1} parent=0 // pred_region
    _
  $region21: #{_evidential_forward.1} parent=0 // pred_fallthru
    _
  // Predicated region
  $region22: #{_evidential_forward.1} parent=0 // pred_check
    _
  $region23: #{_evidential_forward.1} parent=0 // pred_check_branch
    %118 = sbr.rel (0) target = $region25
  $region24: #{_evidential_forward.1} parent=0 // pred_region
    _
  $region25: #{_evidential_forward.1} parent=0 // pred_fallthru
    _
  // Predicated region
  $region26: #{_evidential_forward.1} parent=0 // pred_check
    _
  $region27: #{_evidential_forward.1} parent=0 // pred_check_branch
    %120 = sbr.rel (0) target = $region29
  $region28: #{_evidential_forward.1} parent=0 // pred_region
    _
  $region29: #{_evidential_forward.1} parent=0 // pred_fallthru
    _

</llo_original>
